<compile_context>
chip_gen: v6e
topology: v6e:2x2x1
jax: 0.10.0
libtpu: 0.0.40
codegen_flags: <defaults>
</compile_context>

<pallas_src>
import numpy as np

import jax
import jax.numpy as jnp
from jax.experimental import pallas as pl
from jax.experimental.pallas import tpu as pltpu


def _round_up(n, m):
    return ((n + m - 1) // m) * m


def _concrete(a):
    """Host numpy view of `a` if it is concrete (not a tracer), else None."""
    try:
        return np.asarray(a)
    except Exception:
        return None


def _static_small_int_exponents(a, max_allowed=4):
    """Exponents as python ints if concrete, integer-valued, in [0, max_allowed]."""
    e = _concrete(a)
    if e is None:
        return None
    e = np.asarray(e, np.float64).reshape(-1)
    r = np.rint(e)
    if np.all(np.abs(e - r) < 1e-6) and np.all(r >= 0) and np.all(r <= max_allowed):
        return [int(v) for v in r]
    return None


def _row_product(t):
    """Product over the sublane (feature) axis of (d, tb) -> (1, tb).

    Implemented as a halving tree of static slices + elementwise multiplies
    (pure VPU work, no reduce-op lowering dependence)."""
    leftovers = []
    while t.shape[0] > 1:
        d = t.shape[0]
        if d % 2:
            leftovers.append(t[d - 1:d, :])
            d -= 1
            t = t[:d, :]
        half = d // 2
        t = t[:half, :] * t[half:, :]
    for r in leftovers:
        t = t * r
    return t


def _make_kernel(*, D, tb, B, int_exps1, n2, n3, log_dtype):
    """Build the fused 3-layer EQL kernel with trace-time specializations baked in."""

    def _apply_power(z, w_scalar, static_n):
        if static_n is not None:                      # static small-int exponent
            if static_n == 0:
                return jnp.ones_like(z)
            r = z
            for _ in range(static_n - 1):
                r = r * z
            return r
        # TODO(synk): exp(w*log z) assumes z > 0; torch's z**w edge cases
        # (z <= 0 with integer exponents, 0**0) are not reproduced here.
        return jnp.exp(w_scalar * jnp.log(z))

    def kernel(x_ref, wexp_ref, wlin_ref, scal_ref, o_ref):
        i = pl.program_id(0)

        # (tb, D) natural-layout tile -> (D, tb): features on sublanes, batch on
        # lanes.  Lane-dense compute + lane-dense (1, tb) output stores.
        xt = jnp.transpose(x_ref[...].astype(jnp.float32))

        # Mask dead lanes of the tail tile (out-of-bounds garbage reads) with 1.0
        # so the power / log paths stay finite.  Dead lanes never reach live
        # output (reductions are over D only; boundary writes are masked).
        lane = jax.lax.broadcasted_iota(jnp.int32, (1, tb), 1)
        valid = (i * tb + lane) < B
        xt = jnp.where(valid, xt, 1.0)

        # ---- PowerActivation1: prod_j x_j ** w_j --------------------------------
        if int_exps1 is not None:
            # Integer-exponent fast path: no transcendentals at all (VPU only).
            max_e = max(int_exps1) if int_exps1 else 0
            if max_e == 0:
                p1 = jnp.ones((1, tb), jnp.float32)
            else:
                x_pow = None
                for k in range(1, max_e + 1):
                    if all(e >= k for e in int_exps1):
                        contrib = xt
                    else:
                        contrib = jnp.where(wexp_ref[...] >= (k - 0.5), xt, 1.0)
                    x_pow = contrib if x_pow is None else x_pow * contrib
                p1 = _row_product(x_pow)
        else:
            # Packed log-sum-exp fallback (one log per feature -> EUP bound).
            if log_dtype is not None and log_dtype != jnp.float32:
                # bf16 EUP trick for v6e/v7x (opt-in; not valid on v5e).
                logxt = jnp.log(xt.astype(log_dtype)).astype(jnp.float32)
            else:
                logxt = jnp.log(xt)
            p1 = jnp.exp(jnp.sum(wexp_ref[...] * logxt, axis=0, keepdims=True))

        # ---- Linear1 (D -> 1): sublane reduction --------------------------------
        l1 = jnp.sum(wlin_ref[...] * xt, axis=0, keepdims=True) + scal_ref[0]

        # Hard straight-through switches as true selects (no NaN leakage from the
        # unselected branch, unlike the c0*a + c1*b formulation).
        c_sel, d_sel = scal_ref[7], scal_ref[8]
        f_sel, g_sel = scal_ref[9], scal_ref[10]
        h_sel = scal_ref[11]

        ip2 = jnp.where(c_sel >= 0.5, p1, l1)
        il2 = jnp.where(d_sel >= 0.5, p1, l1)
        y3 = _apply_power(ip2, scal_ref[1], n2)          # PowerActivation2
        y4 = scal_ref[2] * il2 + scal_ref[3]             # Linear2 (1 -> 1)

        ip3 = jnp.where(f_sel >= 0.5, y3, y4)
        il3 = jnp.where(g_sel >= 0.5, y3, y4)
        y5 = _apply_power(ip3, scal_ref[4], n3)          # PowerActivation3
        y6 = scal_ref[5] * il3 + scal_ref[6]             # Linear3 (1 -> 1)

        o_ref[...] = jnp.where(h_sel >= 0.5, y5, y6).astype(o_ref.dtype)

    return kernel


def sparse_composed_model_3layer(x, params, *, tile_b=16384, transcendental_dtype=None):
    """Forward pass.  x: (B, D) (f32 or bf16).  Returns (B, 1) in x.dtype."""
    B, D = x.shape

    # Lane-dense batch tile (multiple of 128), capped so small batches use one tile.
    tb = min(int(tile_b), _round_up(max(B, 1), 128))
    tb = _round_up(tb, 128)
    num_tiles = (B + tb - 1) // tb

    # Trace-time specialization: small non-negative integer exponents skip the
    # per-feature log/exp chain (the EUP is the binding VLIW slot otherwise).
    int_exps1 = _static_small_int_exponents(params["pow1_exp"])
    n2_list = _static_small_int_exponents(params["pow2_exp"])
    n3_list = _static_small_int_exponents(params["pow3_exp"])
    n2 = n2_list[0] if n2_list is not None else None
    n3 = n3_list[0] if n3_list is not None else None

    wexp = params["pow1_exp"].reshape(D, 1).astype(jnp.float32)
    wlin = params["lin1_w"].reshape(D, 1).astype(jnp.float32)

    def _sel(logits):   # ChoiceLayerSTE hard forward: pick first arg iff argmax == 0
        return (jnp.argmax(logits) == 0).astype(jnp.float32)

    scal = jnp.stack([
        params["lin1_b"].reshape(()),
        params["pow2_exp"].reshape(()),
        params["lin2_w"].reshape(()),
        params["lin2_b"].reshape(()),
        params["pow3_exp"].reshape(()),
        params["lin3_w"].reshape(()),
        params["lin3_b"].reshape(()),
        _sel(params["switch_c"]),
        _sel(params["switch_d"]),
        _sel(params["switch_f"]),
        _sel(params["switch_g"]),
        _sel(params["switch_h"]),
    ]).astype(jnp.float32)

    kernel = _make_kernel(D=D, tb=tb, B=B, int_exps1=int_exps1, n2=n2, n3=n3,
                          log_dtype=transcendental_dtype)

    n_trans = ((0 if int_exps1 is not None else D)
               + (0 if n2 is not None else 2)
               + (0 if n3 is not None else 2))
    itemsize = jnp.dtype(x.dtype).itemsize

    out = pl.pallas_call(
        kernel,
        out_shape=jax.ShapeDtypeStruct((1, B), x.dtype),
        grid=(num_tiles,),
        in_specs=[
            pl.BlockSpec((tb, D), lambda i: (i, 0)),                 # x tile, natural (B, D) layout
            pl.BlockSpec((D, 1), lambda i: (0, 0)),                  # pow1 exponents (pinned)
            pl.BlockSpec((D, 1), lambda i: (0, 0)),                  # linear1 weights (pinned)
            pl.BlockSpec(memory_space=pltpu.MemorySpace.SMEM),       # packed per-model scalars
        ],
        out_specs=pl.BlockSpec((1, tb), lambda i: (0, i)),
        compiler_params=pltpu.CompilerParams(
            dimension_semantics=("parallel",),
            # Headroom for the lane-padded (tb, 128) double-buffered x tiles at
            # tb=16384 (~16 MiB) + temporaries; still well under v7x's 64 MiB.
            vmem_limit_bytes=48 * 1024 * 1024,
        ),
        cost_estimate=pl.CostEstimate(
            flops=int(B * (3 * D + 32)),
            transcendentals=int(B * n_trans),
            bytes_accessed=int(B * D * itemsize + B * itemsize),
        ),
    )(x, wexp, wlin, scal)

    # (1, B) lane-dense output -> (B, 1) to match the PyTorch module. Pure reshape.
    return out.reshape(B, 1)


def init_params(key, input_dim):
    k1, k2, k3, k4, k5 = jax.random.split(key, 5)
    bound1 = 1.0 / jnp.sqrt(input_dim)
    return {
        # PowerActivation exponents: init to ones (identity-like start).
        "pow1_exp": jnp.ones((input_dim,), jnp.float32),
        "pow2_exp": jnp.ones((1,), jnp.float32),
        "pow3_exp": jnp.ones((1,), jnp.float32),
        # nn.Linear weights/biases, abs'd as in the module __init__.
        "lin1_w": jnp.abs(jax.random.uniform(k1, (input_dim,), minval=-bound1, maxval=bound1)),
        "lin1_b": jnp.abs(jax.random.uniform(k2, (1,), minval=-bound1, maxval=bound1)),
        "lin2_w": jnp.abs(jax.random.uniform(k3, (1,), minval=-1.0, maxval=1.0)),
        "lin2_b": jnp.abs(jax.random.uniform(k4, (1,), minval=-1.0, maxval=1.0)),
        "lin3_w": jnp.abs(jax.random.uniform(k5, (1,), minval=-1.0, maxval=1.0)),
        "lin3_b": jnp.abs(jax.random.uniform(jax.random.fold_in(k5, 1), (1,), minval=-1.0, maxval=1.0)),
        # Hard-coded switch logits from the module __init__.
        "switch_c": jnp.array([0.0, 3.0], jnp.float32),
        "switch_d": jnp.array([3.0, 0.0], jnp.float32),
        "switch_f": jnp.array([0.0, 3.0], jnp.float32),
        "switch_g": jnp.array([3.0, 0.0], jnp.float32),
        "switch_h": jnp.array([1.0, 1.0], jnp.float32),
    }


def reference_forward(x, params):
    """Pure-JAX reference mirroring the PyTorch forward (hard switches)."""
    def choice(logits, a, b):
        return jnp.where(jnp.argmax(logits) == 0, a, b)

    p1 = jnp.prod(x ** params["pow1_exp"], axis=-1, keepdims=True)
    l1 = x @ params["lin1_w"].reshape(-1, 1) + params["lin1_b"]
    ip2 = choice(params["switch_c"], p1, l1)
    il2 = choice(params["switch_d"], p1, l1)
    y3 = ip2 ** params["pow2_exp"]
    y4 = il2 * params["lin2_w"] + params["lin2_b"]
    ip3 = choice(params["switch_f"], y3, y4)
    il3 = choice(params["switch_g"], y3, y4)
    y5 = ip3 ** params["pow3_exp"]
    y6 = il3 * params["lin3_w"] + params["lin3_b"]
    return choice(params["switch_h"], y5, y6)


if __name__ == "__main__":
    B, D = 256, 16
    key = jax.random.PRNGKey(0)
    kx, kp = jax.random.split(key)
    # Positive inputs (PowerActivation with fractional exponents is only defined for x > 0).
    x = jnp.abs(jax.random.normal(kx, (B, D), jnp.float32)) + 0.5
    params = init_params(kp, D)

    # 1) Integer-exponent fast path (all exponents == 1): zero transcendentals.
    out = jax.block_until_ready(sparse_composed_model_3layer(x, params))
    ref = reference_forward(x, params)
    assert out.shape == (B, 1), out.shape
    assert jnp.allclose(out, ref, rtol=1e-4, atol=1e-5), "int-exponent path mismatch"

    # 2) Fractional-exponent fallback path (packed log-sum-exp on the EUP).
    params_frac = dict(params)
    params_frac["pow1_exp"] = jnp.linspace(0.5, 1.5, D).astype(jnp.float32)
    out_f = jax.block_until_ready(sparse_composed_model_3layer(x, params_frac))
    ref_f = reference_forward(x, params_frac)
    assert out_f.shape == (B, 1), out_f.shape
    assert jnp.allclose(out_f, ref_f, rtol=1e-3, atol=1e-5), "fractional path mismatch"

    print("KERNEL_OK")
</pallas_src>

<mosaic_0001>
module attributes {stable_mosaic.version = 11 : i64} {
  func.func @kernel(%arg0: i32, %arg1: memref<256x16xf32, #tpu.memory_space<vmem>>, %arg2: memref<16x1xf32, #tpu.memory_space<vmem>>, %arg3: memref<16x1xf32, #tpu.memory_space<vmem>>, %arg4: memref<12xf32, #tpu.memory_space<smem>>, %arg5: memref<1x256xf32, #tpu.memory_space<vmem>>) attributes {dimension_semantics = [#tpu.dimension_semantics<parallel>], iteration_bounds = array<i64: 1>, scalar_prefetch = 0 : i64, scratch_operands = 0 : i64, tpu.core_type = #tpu.core_type<tc>, window_params = [{transform_indices = @transform_0, window_bounds = array<i64: 256, 16>}, {pipeline_mode = #tpu.pipeline_mode<synchronous>, transform_indices = @transform_1, window_bounds = array<i64: 16, 1>}, {pipeline_mode = #tpu.pipeline_mode<synchronous>, transform_indices = @transform_2, window_bounds = array<i64: 16, 1>}, {transform_indices = @transform_3, window_bounds = array<i64: 12>}, {transform_indices = @transform_4, window_bounds = array<i64: 1, 256>}]} {
    %c0 = arith.constant 0 : index
    %c0_0 = arith.constant 0 : index
    %0 = vector.load %arg1[%c0, %c0_0] : memref<256x16xf32, #tpu.memory_space<vmem>>, vector<256x16xf32>
    %1 = tpu.transpose %0, [1, 0] : vector<256x16xf32> -> vector<16x256xf32>
    %2 = tpu.iota {dimensions = array<i32: 1>} : vector<1x256xi32>
    %c256_i32 = arith.constant 256 : i32
    %3 = arith.muli %arg0, %c256_i32 : i32
    %4 = vector.broadcast %3 : i32 to vector<1x256xi32>
    %5 = arith.addi %4, %2 : vector<1x256xi32>
    %c256_i32_1 = arith.constant 256 : i32
    %6 = vector.broadcast %c256_i32_1 : i32 to vector<1x256xi32>
    %7 = arith.cmpi slt, %5, %6 : vector<1x256xi32>
    %cst = arith.constant 1.000000e+00 : f32
    %8 = vector.shape_cast %7 : vector<1x256xi1> to vector<1x256xi1>
    %9 = vector.broadcast %8 : vector<1x256xi1> to vector<16x256xi1>
    %10 = vector.broadcast %cst : f32 to vector<16x256xf32>
    %11 = arith.select %9, %1, %10 : vector<16x256xi1>, vector<16x256xf32>
    %12 = vector.extract_strided_slice %11 {offsets = [0, 0], sizes = [8, 256], strides = [1, 1]} : vector<16x256xf32> to vector<8x256xf32>
    %13 = vector.extract_strided_slice %11 {offsets = [8, 0], sizes = [8, 256], strides = [1, 1]} : vector<16x256xf32> to vector<8x256xf32>
    %14 = arith.mulf %12, %13 : vector<8x256xf32>
    %15 = vector.extract_strided_slice %14 {offsets = [0, 0], sizes = [4, 256], strides = [1, 1]} : vector<8x256xf32> to vector<4x256xf32>
    %16 = vector.extract_strided_slice %14 {offsets = [4, 0], sizes = [4, 256], strides = [1, 1]} : vector<8x256xf32> to vector<4x256xf32>
    %17 = arith.mulf %15, %16 : vector<4x256xf32>
    %18 = vector.extract_strided_slice %17 {offsets = [0, 0], sizes = [2, 256], strides = [1, 1]} : vector<4x256xf32> to vector<2x256xf32>
    %19 = vector.extract_strided_slice %17 {offsets = [2, 0], sizes = [2, 256], strides = [1, 1]} : vector<4x256xf32> to vector<2x256xf32>
    %20 = arith.mulf %18, %19 : vector<2x256xf32>
    %21 = vector.extract_strided_slice %20 {offsets = [0, 0], sizes = [1, 256], strides = [1, 1]} : vector<2x256xf32> to vector<1x256xf32>
    %22 = vector.extract_strided_slice %20 {offsets = [1, 0], sizes = [1, 256], strides = [1, 1]} : vector<2x256xf32> to vector<1x256xf32>
    %23 = arith.mulf %21, %22 : vector<1x256xf32>
    %c0_2 = arith.constant 0 : index
    %c0_3 = arith.constant 0 : index
    %24 = vector.load %arg3[%c0_2, %c0_3] : memref<16x1xf32, #tpu.memory_space<vmem>>, vector<16x1xf32>
    %25 = vector.broadcast %24 : vector<16x1xf32> to vector<16x256xf32>
    %26 = arith.mulf %25, %11 : vector<16x256xf32>
    %cst_4 = arith.constant dense<0.000000e+00> : vector<256xf32>
    %27 = vector.multi_reduction <add>, %26, %cst_4 [0] : vector<16x256xf32> to vector<256xf32>
    %28 = vector.shape_cast %27 : vector<256xf32> to vector<1x256xf32>
    %c0_5 = arith.constant 0 : index
    %29 = memref.load %arg4[%c0_5] : memref<12xf32, #tpu.memory_space<smem>>
    %30 = vector.broadcast %29 : f32 to vector<1x256xf32>
    %31 = arith.addf %28, %30 : vector<1x256xf32>
    %c7 = arith.constant 7 : index
    %32 = memref.load %arg4[%c7] : memref<12xf32, #tpu.memory_space<smem>>
    %c8 = arith.constant 8 : index
    %33 = memref.load %arg4[%c8] : memref<12xf32, #tpu.memory_space<smem>>
    %c9 = arith.constant 9 : index
    %34 = memref.load %arg4[%c9] : memref<12xf32, #tpu.memory_space<smem>>
    %c10 = arith.constant 10 : index
    %35 = memref.load %arg4[%c10] : memref<12xf32, #tpu.memory_space<smem>>
    %c11 = arith.constant 11 : index
    %36 = memref.load %arg4[%c11] : memref<12xf32, #tpu.memory_space<smem>>
    %cst_6 = arith.constant 5.000000e-01 : f32
    %37 = arith.cmpf oge, %32, %cst_6 : f32
    %38 = arith.select %37, %23, %31 : vector<1x256xf32>
    %cst_7 = arith.constant 5.000000e-01 : f32
    %39 = arith.cmpf oge, %33, %cst_7 : f32
    %40 = arith.select %39, %23, %31 : vector<1x256xf32>
    %c2 = arith.constant 2 : index
    %41 = memref.load %arg4[%c2] : memref<12xf32, #tpu.memory_space<smem>>
    %42 = vector.broadcast %41 : f32 to vector<1x256xf32>
    %43 = arith.mulf %42, %40 : vector<1x256xf32>
    %c3 = arith.constant 3 : index
    %44 = memref.load %arg4[%c3] : memref<12xf32, #tpu.memory_space<smem>>
    %45 = vector.broadcast %44 : f32 to vector<1x256xf32>
    %46 = arith.addf %43, %45 : vector<1x256xf32>
    %cst_8 = arith.constant 5.000000e-01 : f32
    %47 = arith.cmpf oge, %34, %cst_8 : f32
    %48 = arith.select %47, %38, %46 : vector<1x256xf32>
    %cst_9 = arith.constant 5.000000e-01 : f32
    %49 = arith.cmpf oge, %35, %cst_9 : f32
    %50 = arith.select %49, %38, %46 : vector<1x256xf32>
    %c5 = arith.constant 5 : index
    %51 = memref.load %arg4[%c5] : memref<12xf32, #tpu.memory_space<smem>>
    %52 = vector.broadcast %51 : f32 to vector<1x256xf32>
    %53 = arith.mulf %52, %50 : vector<1x256xf32>
    %c6 = arith.constant 6 : index
    %54 = memref.load %arg4[%c6] : memref<12xf32, #tpu.memory_space<smem>>
    %55 = vector.broadcast %54 : f32 to vector<1x256xf32>
    %56 = arith.addf %53, %55 : vector<1x256xf32>
    %cst_10 = arith.constant 5.000000e-01 : f32
    %57 = arith.cmpf oge, %36, %cst_10 : f32
    %58 = arith.select %57, %48, %56 : vector<1x256xf32>
    %c0_11 = arith.constant 0 : index
    %c0_12 = arith.constant 0 : index
    %59 = vector.load %arg5[%c0_11, %c0_12] : memref<1x256xf32, #tpu.memory_space<vmem>>, vector<1x256xf32>
    tpu.vector_store %arg5[%c0_11, %c0_12], %58 {strides = array<i32>} : memref<1x256xf32, #tpu.memory_space<vmem>>, vector<1x256xf32>,
    return
  }
  func.func @transform_0(%arg0: i32) -> (i32, i32) {
    %c0_i32 = arith.constant 0 : i32
    %c0_i32_0 = arith.constant 0 : i32
    return %arg0, %c0_i32 : i32, i32
  }
  func.func @transform_1(%arg0: i32) -> (i32, i32) {
    %c0_i32 = arith.constant 0 : i32
    %c0_i32_0 = arith.constant 0 : i32
    %c0_i32_1 = arith.constant 0 : i32
    return %c0_i32, %c0_i32_0 : i32, i32
  }
  func.func @transform_2(%arg0: i32) -> (i32, i32) {
    %c0_i32 = arith.constant 0 : i32
    %c0_i32_0 = arith.constant 0 : i32
    %c0_i32_1 = arith.constant 0 : i32
    return %c0_i32, %c0_i32_0 : i32, i32
  }
  func.func @transform_3(%arg0: i32) -> i32 {
    %c0_i32 = arith.constant 0 : i32
    %c0_i32_0 = arith.constant 0 : i32
    return %c0_i32 : i32
  }
  func.func @transform_4(%arg0: i32) -> (i32, i32) {
    %c0_i32 = arith.constant 0 : i32
    %c0_i32_0 = arith.constant 0 : i32
    return %c0_i32, %arg0 : i32, i32
  }
}

</mosaic_0001>

<llo_original>
// kernel: tpu_custom_call.1
$region0: #{tpu_custom_call.1}
  #allocation0 [shape = 'u32[]', space=smem, size = 0x4, offset = 0x4, fixed_abs, tag = 'smem constant byte address 0x4 - core index']
  #allocation1 [shape = 'u32[144,128]{1,0:T(1,128)}', space=vmem, size = 0x12000, scoped, tag = 'internal scratch']
  %s0 = inlined_call_operand.vmem [shape: f32[256,16], index: 0, kind: input, shape index: {}]
  %s1 = inlined_call_operand.vmem [shape: f32[16,1], index: 1, kind: input, shape index: {}]
  %s2 = inlined_call_operand.vmem [shape: f32[16,1], index: 2, kind: input, shape index: {}]
  %s3 = inlined_call_operand.vmem [shape: f32[12], index: 3, kind: input, shape index: {}]
  %s4 = inlined_call_operand.hbm [shape: f32[1,256], index: 4, kind: output, shape index: {}]
  %s5 = sld [smem:[#allocation0]]
  $region30: #{tpu_custom_call.1} parent=0
    _
  %s7 = ssub.s32 1, %s5
  %s8 = scalar_select 0, %s7, %s5
  $region1: #{tpu_custom_call.1} parent=0
    #allocation2 [shape = 'u8[512]{0}', space=smem, size = 0x200, scoped, tag = 'input window, operand 3, single buffered']
    #allocation3 [shape = 's32[1]{0}', space=sflag, size = 0x4, scoped, tag = 'scoped memory for tpu_custom_call.1']
    #allocation4 [shape = 's32[1]{0}', space=sflag, size = 0x4, scoped, tag = 'scoped memory for tpu_custom_call.1']
    #allocation5 [shape = 'u8[1024]{0}', space=vmem, size = 0x400, scoped, tag = 'output window, operand 0, single buffered']
    %9 = vsyncpa [#allocation4], 0
    %10 = vsyncpa [#allocation3], 0
    // Predicated region
    $region2: #{tpu_custom_call.1} parent=1 // pred_check
      _
    $region3: #{tpu_custom_call.1} parent=1 // pred_check_branch
      %12 = sbr.rel (0) target = $region5
    $region4: #{tpu_custom_call.1} parent=1 // pred_region
      _
    $region5: #{tpu_custom_call.1} parent=1 // pred_fallthru
      _
    // Predicated region
    $region6: #{tpu_custom_call.1} parent=1 // pred_check
      _
    $region7: #{tpu_custom_call.1} parent=1 // pred_check_branch
      %14 = sbr.rel (0) target = $region9
    $region8: #{tpu_custom_call.1} parent=1 // pred_region
      _
    $region9: #{tpu_custom_call.1} parent=1 // pred_fallthru
      _
    // Predicated region
    $region10: #{tpu_custom_call.1} parent=1 // pred_check
      _
    $region11: #{tpu_custom_call.1} parent=1 // pred_check_branch
      %16 = sbr.rel (0) target = $region13
    $region12: #{tpu_custom_call.1} parent=1 // pred_region
      _
    $region13: #{tpu_custom_call.1} parent=1 // pred_fallthru
      _
    // Predicated region
    $region14: #{tpu_custom_call.1} parent=1 // pred_check
      _
    $region15: #{tpu_custom_call.1} parent=1 // pred_check_branch
      %18 = sbr.rel (0) target = $region17
    $region16: #{tpu_custom_call.1} parent=1 // pred_region
      %s20 = ssub.s32 16, 16
      %21 = vsyncadd [#allocation4], %s20
      %s23 = sshll.u32 %s3, 4
      %s24 = int_to_ptr.vmem [resolvable:$true] %s23
      %26 = dma.vmem_to_smem %s24, 16, [#allocation2], [#allocation4]
    $region17: #{tpu_custom_call.1} parent=1 // pred_fallthru
      _
    // Predicated region
    $region18: #{tpu_custom_call.1} parent=1 // pred_check
      _
    $region19: #{tpu_custom_call.1} parent=1 // pred_check_branch
      %28 = sbr.rel (0) target = $region21
    $region20: #{tpu_custom_call.1} parent=1 // pred_region
      %29 = dma.done [#allocation4], 16
    $region21: #{tpu_custom_call.1} parent=1 // pred_fallthru
      _
    %30 = sfence
    %v31 = vld [vmem:[%s0] sm:$0xff]
    %v32 = vld [vmem:[%s0 + $0x8] sm:$0xff]
    %v33 = vld [vmem:[%s0 + $0x10] sm:$0xff]
    %v34 = vld [vmem:[%s0 + $0x18] sm:$0xff]
    %v35 = vld [vmem:[%s0 + $0x20] sm:$0xff]
    %v36 = vld [vmem:[%s0 + $0x28] sm:$0xff]
    %v37 = vld [vmem:[%s0 + $0x30] sm:$0xff]
    %v38 = vld [vmem:[%s0 + $0x38] sm:$0xff]
    %v39 = vld [vmem:[%s0 + $0x40] sm:$0xff]
    %v40 = vld [vmem:[%s0 + $0x48] sm:$0xff]
    %v41 = vld [vmem:[%s0 + $0x50] sm:$0xff]
    %v42 = vld [vmem:[%s0 + $0x58] sm:$0xff]
    %v43 = vld [vmem:[%s0 + $0x60] sm:$0xff]
    %v44 = vld [vmem:[%s0 + $0x68] sm:$0xff]
    %v45 = vld [vmem:[%s0 + $0x70] sm:$0xff]
    %v46 = vld [vmem:[%s0 + $0x78] sm:$0xff]
    %v47 = vld [vmem:[%s0 + $0x80] sm:$0xff]
    %v48 = vld [vmem:[%s0 + $0x88] sm:$0xff]
    %v49 = vld [vmem:[%s0 + $0x90] sm:$0xff]
    %v50 = vld [vmem:[%s0 + $0x98] sm:$0xff]
    %v51 = vld [vmem:[%s0 + $0xa0] sm:$0xff]
    %v52 = vld [vmem:[%s0 + $0xa8] sm:$0xff]
    %v53 = vld [vmem:[%s0 + $0xb0] sm:$0xff]
    %v54 = vld [vmem:[%s0 + $0xb8] sm:$0xff]
    %v55 = vld [vmem:[%s0 + $0xc0] sm:$0xff]
    %v56 = vld [vmem:[%s0 + $0xc8] sm:$0xff]
    %v57 = vld [vmem:[%s0 + $0xd0] sm:$0xff]
    %v58 = vld [vmem:[%s0 + $0xd8] sm:$0xff]
    %v59 = vld [vmem:[%s0 + $0xe0] sm:$0xff]
    %v60 = vld [vmem:[%s0 + $0xe8] sm:$0xff]
    %v61 = vld [vmem:[%s0 + $0xf0] sm:$0xff]
    %v62 = vld [vmem:[%s0 + $0xf8] sm:$0xff]
    %63 = vxpose.xlu0.b32.start [1/16] %v31, 128
    %64 = vxpose.xlu0.b32.cont [2/16] %v32, 128
    %65 = vxpose.xlu0.b32.cont [3/16] %v33, 128
    %66 = vxpose.xlu0.b32.cont [4/16] %v34, 128
    %67 = vxpose.xlu0.b32.cont [5/16] %v35, 128
    %68 = vxpose.xlu0.b32.cont [6/16] %v36, 128
    %69 = vxpose.xlu0.b32.cont [7/16] %v37, 128
    %70 = vxpose.xlu0.b32.cont [8/16] %v38, 128
    %71 = vxpose.xlu0.b32.cont [9/16] %v39, 128
    %72 = vxpose.xlu0.b32.cont [10/16] %v40, 128
    %73 = vxpose.xlu0.b32.cont [11/16] %v41, 128
    %74 = vxpose.xlu0.b32.cont [12/16] %v42, 128
    %75 = vxpose.xlu0.b32.cont [13/16] %v43, 128
    %76 = vxpose.xlu0.b32.cont [14/16] %v44, 128
    %77 = vxpose.xlu0.b32.cont [15/16] %v45, 128
    %78 = vxpose.xlu0.b32.end [16/16] %v46, 128
    %v79 = vpop.trf.xlu0
    %v80 = vpop.trf.xlu0
    %v81 = vpop.trf.xlu0
    %v82 = vpop.trf.xlu0
    %v83 = vpop.trf.xlu0
    %v84 = vpop.trf.xlu0
    %v85 = vpop.trf.xlu0
    %v86 = vpop.trf.xlu0
    %v87 = vpop.trf.xlu0
    %v88 = vpop.trf.xlu0
    %v89 = vpop.trf.xlu0
    %v90 = vpop.trf.xlu0
    %v91 = vpop.trf.xlu0
    %v92 = vpop.trf.xlu0
    %v93 = vpop.trf.xlu0
    %v94 = vpop.trf.xlu0
    %95 = vxpose.xlu0.b32.start [1/16] %v47, 128
    %96 = vxpose.xlu0.b32.cont [2/16] %v48, 128
    %97 = vxpose.xlu0.b32.cont [3/16] %v49, 128
    %98 = vxpose.xlu0.b32.cont [4/16] %v50, 128
    %99 = vxpose.xlu0.b32.cont [5/16] %v51, 128
    %100 = vxpose.xlu0.b32.cont [6/16] %v52, 128
    %101 = vxpose.xlu0.b32.cont [7/16] %v53, 128
    %102 = vxpose.xlu0.b32.cont [8/16] %v54, 128
    %103 = vxpose.xlu0.b32.cont [9/16] %v55, 128
    %104 = vxpose.xlu0.b32.cont [10/16] %v56, 128
    %105 = vxpose.xlu0.b32.cont [11/16] %v57, 128
    %106 = vxpose.xlu0.b32.cont [12/16] %v58, 128
    %107 = vxpose.xlu0.b32.cont [13/16] %v59, 128
    %108 = vxpose.xlu0.b32.cont [14/16] %v60, 128
    %109 = vxpose.xlu0.b32.cont [15/16] %v61, 128
    %110 = vxpose.xlu0.b32.end [16/16] %v62, 128
    %v111 = vpop.trf.xlu0
    %v112 = vpop.trf.xlu0
    %v113 = vpop.trf.xlu0
    %v114 = vpop.trf.xlu0
    %v115 = vpop.trf.xlu0
    %v116 = vpop.trf.xlu0
    %v117 = vpop.trf.xlu0
    %v118 = vpop.trf.xlu0
    %v119 = vpop.trf.xlu0
    %v120 = vpop.trf.xlu0
    %v121 = vpop.trf.xlu0
    %v122 = vpop.trf.xlu0
    %v123 = vpop.trf.xlu0
    %v124 = vpop.trf.xlu0
    %v125 = vpop.trf.xlu0
    %v126 = vpop.trf.xlu0
    %v127 = vlaneseq
    %v128 = vand.u32 %v127, 127
    %v129 = vadd.s32 %v128, 128
    %s130 = smul.u32 0, 256
    %v131 = vstv %s130
    %v132 = vadd.s32 %v131, %v128
    %v133 = vadd.s32 %v131, %v129
    %vm134 = vcmp.lt.s32.totalorder %v132, 256
    %vm135 = vcmp.lt.s32.totalorder %v133, 256
    %v136 = vsel %vm134, 1, 0
    %v137 = vsel %vm135, 1, 0
    %vm138 = vcmp.eq.s32.totalorder %v136, 1
    %vm139 = vcmp.eq.s32.totalorder %v137, 1
    %v140 = vsel %vm138, %v79, 1.0
    %v141 = vsel %vm139, %v111, 1.0
    %v142 = vsel %vm138, %v80, 1.0
    %v143 = vsel %vm139, %v112, 1.0
    %v144 = vmul.f32 %v140, %v142
    %v145 = vmul.f32 %v141, %v143
    %v148 = vrot.slane %v144, 4
    %v149 = vrot.slane %v145, 4
    %v152 = vmul.f32 %v144, %v148
    %v153 = vmul.f32 %v145, %v149
    %v156 = vrot.slane %v152, 2
    %v157 = vrot.slane %v153, 2
    %v160 = vmul.f32 %v152, %v156
    %v161 = vmul.f32 %v153, %v157
    %v164 = vrot.slane %v160, 1
    %v165 = vrot.slane %v161, 1
    %v168 = vmul.f32 %v160, %v164
    %v169 = vmul.f32 %v161, %v165
    %v170 = vld [vmem:[%s2] sm:$0xff]
    %v171 = vld [vmem:[%s2 + $0x8] sm:$0xff]
    %173 = vset.pattern.permute.xlu0 0
    %174 = vperm.xlu0 %173, %v170
    %v175 = vpop.permute.xlu0 %174
    %178 = vset.pattern.permute.xlu0 0
    %179 = vperm.xlu0 %178, %v171
    %v180 = vpop.permute.xlu0 %179
    %v182 = vmul.f32 %v175, %v140
    %v183 = vmul.f32 %v175, %v141
    %v184 = vmul.f32 %v180, %v142
    %v185 = vmul.f32 %v180, %v143
    %v186 = vadd.f32 %v182, %v184
    %v187 = vrot.slane %v186, 4
    %v188 = vadd.f32 %v186, %v187
    %v189 = vrot.slane %v188, 2
    %v190 = vadd.f32 %v188, %v189
    %v191 = vrot.slane %v190, 1
    %v192 = vadd.f32 %v190, %v191
    %v193 = vadd.f32 %v183, %v185
    %v194 = vrot.slane %v193, 4
    %v195 = vadd.f32 %v193, %v194
    %v196 = vrot.slane %v195, 2
    %v197 = vadd.f32 %v195, %v196
    %v198 = vrot.slane %v197, 1
    %v199 = vadd.f32 %v197, %v198
    %s200 = sld [smem:[#allocation2]]
    %v201 = vstv %s200
    %v202 = vadd.f32 %v192, %v201
    %v203 = vadd.f32 %v199, %v201
    %s204 = sld [smem:[#allocation2 + $0x7]]
    %s205 = sld [smem:[#allocation2 + $0x8]]
    %s206 = sld [smem:[#allocation2 + $0x9]]
    %s207 = sld [smem:[#allocation2 + $0xa]]
    %s208 = sld [smem:[#allocation2 + $0xb]]
    %p209 = scmp.ge.f32.partialorder %s204, 0.5
    %s210 = scalar_select %p209, 1, 0
    %v211 = vstv %s210
    %vm212 = vcmp.eq.s32.totalorder %v211, 1
    %v213 = vsel %vm212, %v168, %v202
    %v214 = vsel %vm212, %v169, %v203
    %p215 = scmp.ge.f32.partialorder %s205, 0.5
    %s216 = scalar_select %p215, 1, 0
    %v217 = vstv %s216
    %vm218 = vcmp.eq.s32.totalorder %v217, 1
    %v219 = vsel %vm218, %v168, %v202
    %v220 = vsel %vm218, %v169, %v203
    %s221 = sld [smem:[#allocation2 + $0x2]]
    %v222 = vstv %s221
    %v223 = vmul.f32 %v222, %v219
    %v224 = vmul.f32 %v222, %v220
    %s225 = sld [smem:[#allocation2 + $0x3]]
    %v226 = vstv %s225
    %v227 = vadd.f32 %v223, %v226
    %v228 = vadd.f32 %v224, %v226
    %p229 = scmp.ge.f32.partialorder %s206, 0.5
    %s230 = scalar_select %p229, 1, 0
    %v231 = vstv %s230
    %vm232 = vcmp.eq.s32.totalorder %v231, 1
    %v233 = vsel %vm232, %v213, %v227
    %v234 = vsel %vm232, %v214, %v228
    %p235 = scmp.ge.f32.partialorder %s207, 0.5
    %s236 = scalar_select %p235, 1, 0
    %v237 = vstv %s236
    %vm238 = vcmp.eq.s32.totalorder %v237, 1
    %v239 = vsel %vm238, %v213, %v227
    %v240 = vsel %vm238, %v214, %v228
    %s241 = sld [smem:[#allocation2 + $0x5]]
    %v242 = vstv %s241
    %v243 = vmul.f32 %v242, %v239
    %v244 = vmul.f32 %v242, %v240
    %s245 = sld [smem:[#allocation2 + $0x6]]
    %v246 = vstv %s245
    %v247 = vadd.f32 %v243, %v246
    %v248 = vadd.f32 %v244, %v246
    %p249 = scmp.ge.f32.partialorder %s208, 0.5
    %s250 = scalar_select %p249, 1, 0
    %v251 = vstv %s250
    %vm252 = vcmp.eq.s32.totalorder %v251, 1
    %v253 = vsel %vm252, %v233, %v247
    %v254 = vsel %vm252, %v234, %v248
    %v257 = vcombine.low %v253, %v254
    %v259 = vunpack.c.l.s4 1966171168
    %v260 = vunpack.c.0.s8 %v259
    %v261 = vlaneseq
    %v262 = vshrl.u32 %v261, 7
    %v263 = vsub.s32 %v260, %v262
    %v264 = vrot.slane %v257, %v263
    %v266 = vunpack.c.l.s4 1966171168
    %v267 = vunpack.c.0.s8 %v266
    %v268 = vlaneseq
    %v269 = vshrl.u32 %v268, 7
    %v270 = vsub.s32 %v267, %v269
    %v271 = vrot.slane %v264, %v270
    %v273 = vlaneseq
    %vm274 = vcmp.ge.s32.totalorder %v273, 0
    %vm275 = vcmp.lt.s32.totalorder %v273, 256
    %vm276 = vmand %vm274, %vm275
    %277 = vst.msk [vmem:[#allocation5] sm:$0x3] %vm276, %v271
    // Predicated region
    $region22: #{tpu_custom_call.1} parent=1 // pred_check
      _
    $region23: #{tpu_custom_call.1} parent=1 // pred_check_branch
      %279 = sbr.rel (0) target = $region25
    $region24: #{tpu_custom_call.1} parent=1 // pred_region
      %s281 = ssub.s32 32, 32
      %282 = vsyncadd [#allocation3], %s281
      %s284 = sshll.u32 [#allocation5], 4
      %s285 = int_to_ptr.vmem [resolvable:$true] %s284
      %287 = dma.vmem_to_hbm [thread:$0]  %s285, 32, %s4, [#allocation3]
    $region25: #{tpu_custom_call.1} parent=1 // pred_fallthru
      _
    // Predicated region
    $region26: #{tpu_custom_call.1} parent=1 // pred_check
      _
    $region27: #{tpu_custom_call.1} parent=1 // pred_check_branch
      %289 = sbr.rel (0) target = $region29
    $region28: #{tpu_custom_call.1} parent=1 // pred_region
      %290 = dma.done [#allocation3], 32
    $region29: #{tpu_custom_call.1} parent=1 // pred_fallthru
      _
    %291 = vsyncpa [#allocation3], 1
    %292 = vsyncpa [#allocation4], 1

</llo_original>
